<compile_context>
chip_gen: v5e
topology: v5e:2x2
jax: 0.10.0
libtpu: 0.0.40
codegen_flags: <defaults>
</compile_context>

<pallas_src>
import functools

import jax
import jax.numpy as jnp
from jax.experimental import pallas as pl
from jax.experimental.pallas import tpu as pltpu


def _pick_rows(total_rows, width, itemsize, block_bytes):
    """Largest multiple-of-8 row count whose block is <= block_bytes."""
    rows = block_bytes // max(1, width * itemsize)
    rows = max(8, (rows // 8) * 8)
    if rows >= total_rows:
        return total_rows          # whole (packed) array fits in one block
    return rows


def _word_dropout_kernel(keep_threshold, tile_r, width, hidden, kpack,
                         seed_ref, x_ref, o_ref):
    """One grid step handles one (tile_r, width) slab of flat (packed) rows."""
    i = pl.program_id(0)
    seed_u = seed_ref[0].astype(jnp.uint32)

    # Flat packed-row index for every row of this tile: (tile_r, 1).
    row = (jax.lax.broadcasted_iota(jnp.uint32, (tile_r, 1), 0)
           + i.astype(jnp.uint32) * jnp.uint32(tile_r))

    # Stateless murmur3-finalizer-style hash of (seed, row) -> uniform uint32.
    z = row ^ (seed_u * jnp.uint32(0x9E3779B1))
    z = z * jnp.uint32(0x85EBCA6B)
    z = z ^ (z >> 13)
    z = z * jnp.uint32(0xC2B2AE35)
    z = z ^ (z >> 16)

    x = x_ref[...]
    thr = jnp.uint32(keep_threshold)

    if kpack == 1:
        # One word per row: (tile_r, 1) keep mask lane-broadcasts over hidden.
        # TODO(synk): on v7x with narrow rows (width==128, bf16) this per-row
        # hash (1/128 lane utilization) can become the binding VALU slot; a
        # lane-major hash + one XLU transpose would remove that tax.
        keep = (z >> 8) < thr
        o_ref[...] = jnp.where(keep, x, jnp.zeros_like(x))
    else:
        # kpack words share one 128-lane row; mix the lane-group id into the
        # row hash so each word gets an independent draw. hidden is a power of
        # two here (it divides 128), so the group id is a cheap shift.
        shift = hidden.bit_length() - 1
        grp = jax.lax.broadcasted_iota(jnp.uint32, (1, width), 1) >> shift
        zz = z ^ (grp * jnp.uint32(0x9E3779B9))
        zz = zz * jnp.uint32(0x7FEB352D)
        zz = zz ^ (zz >> 15)
        zz = zz * jnp.uint32(0x846CA68B)
        keep = (zz >> 8) < thr                       # (tile_r, width)
        o_ref[...] = jnp.where(keep, x, jnp.zeros_like(x))


def word_dropout(x, *, dropout_rate=0.1, seed=0, training=True,
                 block_bytes=8 * 1024 * 1024, donate=False):
    """Word-level dropout on (B, S, H). Identity when not training or rate==0."""
    assert 0.0 <= dropout_rate < 1.0, "0.0 <= dropout rate < 1.0 must be satisfied!"
    if (not training) or dropout_rate == 0.0:
        return x

    B, S, H = x.shape
    R = B * S
    itemsize = jnp.dtype(x.dtype).itemsize

    # Lane-dense repack: fold kpack consecutive words into one 128-lane row.
    kpack = 1
    if H < 128 and 128 % H == 0 and R % (128 // H) == 0:
        kpack = 128 // H
    # TODO(synk): H that doesn't divide 128 (or H % 128 != 0 above 128) still
    # takes lane-masked stores on the trailing partial vreg; a pad-to-128
    # repack would recover that bandwidth too.
    Rp = R // kpack
    W = H * kpack
    xr = x.reshape(Rp, W)                 # free metadata reshape

    tile_r = _pick_rows(Rp, W, itemsize, block_bytes)
    grid_r = pl.cdiv(Rp, tile_r)          # remainder block handled by Pallas

    # P(keep) quantized to 1/2^24 resolution.
    keep_threshold = int(round((1.0 - dropout_rate) * float(1 << 24)))

    seed_arr = jnp.asarray([seed], dtype=jnp.int32)
    kernel = functools.partial(_word_dropout_kernel, keep_threshold,
                               tile_r, W, H, kpack)

    out = pl.pallas_call(
        kernel,
        out_shape=jax.ShapeDtypeStruct((Rp, W), x.dtype),
        grid_spec=pltpu.PrefetchScalarGridSpec(
            num_scalar_prefetch=1,         # seed lands in SMEM
            grid=(grid_r,),
            in_specs=[pl.BlockSpec((tile_r, W), lambda i, seed: (i, 0))],
            out_specs=pl.BlockSpec((tile_r, W), lambda i, seed: (i, 0)),
        ),
        compiler_params=pltpu.CompilerParams(
            # Mask is a stateless hash of (seed, flat row): steps are order
            # independent, so the grid shards across TensorCores.
            dimension_semantics=("parallel",),
            # Room for double-buffered in+out at ~8 MiB blocks, with headroom
            # on v7x's 64 MiB physical VMEM (v5e/v6e have 128 MiB).
            vmem_limit_bytes=48 * 1024 * 1024,
        ),
        cost_estimate=pl.CostEstimate(
            flops=R * H,                   # one select per element
            transcendentals=0,
            bytes_accessed=2 * R * H * itemsize + 4,
        ),
        # Optional in-place variant (destroys the input buffer).
        input_output_aliases=({1: 0} if donate else {}),
    )(seed_arr, xr)

    return out.reshape(B, S, H)


if __name__ == "__main__":
    key = jax.random.PRNGKey(0)

    # --- Small case consistent with the module: (batch=2, seq=8, hidden=32) ---
    B, S, H = 2, 8, 32
    x = jax.random.normal(key, (B, S, H), dtype=jnp.float32)

    y = jax.block_until_ready(word_dropout(x, dropout_rate=0.1, seed=1234))
    kept = jnp.all(y == x, axis=-1)
    dropped = jnp.all(y == 0.0, axis=-1)
    assert bool(jnp.all(kept | dropped)), "word mask was not broadcast per-word"

    # Deterministic given the same seed.
    y2 = jax.block_until_ready(word_dropout(x, dropout_rate=0.1, seed=1234))
    assert bool(jnp.all(y == y2)), "same seed must be deterministic"

    # Eval mode (or dropout_rate=0): identity, like the PyTorch module.
    y_eval = word_dropout(x, dropout_rate=0.1, training=False)
    assert bool(jnp.all(y_eval == x)), "eval mode must be identity"

    # --- Multi-tile H=128 path (kpack=1), forcing several row blocks ---
    B2, S2, H2 = 4, 512, 128
    x2 = jax.random.normal(jax.random.PRNGKey(1), (B2, S2, H2), dtype=jnp.float32)
    y3 = jax.block_until_ready(
        word_dropout(x2, dropout_rate=0.3, seed=7, block_bytes=256 * 1024))
    kept3 = jnp.all(y3 == x2, axis=-1)
    drop3 = jnp.all(y3 == 0.0, axis=-1)
    assert bool(jnp.all(kept3 | drop3)), "tiled word mask was not per-word"
    drop_frac = float(jnp.mean(drop3.astype(jnp.float32)))
    assert abs(drop_frac - 0.3) < 0.12, f"drop fraction {drop_frac} far from 0.3"

    # --- bf16 + lane-dense packed path (H=64 -> kpack=2) ---
    B3, S3, H3 = 2, 64, 64
    x3 = jax.random.normal(jax.random.PRNGKey(2), (B3, S3, H3), dtype=jnp.bfloat16)
    y4 = jax.block_until_ready(word_dropout(x3, dropout_rate=0.5, seed=99))
    kept4 = jnp.all(y4 == x3, axis=-1)
    drop4 = jnp.all(y4 == 0.0, axis=-1)
    assert bool(jnp.all(kept4 | drop4)), "bf16 packed word mask was not per-word"

    print("KERNEL_OK")
</pallas_src>

<mosaic_0001>
module attributes {stable_mosaic.version = 11 : i64} {
  func.func @_word_dropout_kernel(%arg0: i32, %arg1: memref<1xi32, #tpu.memory_space<smem>>, %arg2: memref<4x128xf32, #tpu.memory_space<vmem>>, %arg3: memref<4x128xf32, #tpu.memory_space<vmem>>) attributes {dimension_semantics = [#tpu.dimension_semantics<parallel>], iteration_bounds = array<i64: 1>, scalar_prefetch = 1 : i64, scratch_operands = 0 : i64, tpu.core_type = #tpu.core_type<tc>, window_params = [{transform_indices = @transform_0, window_bounds = array<i64: 4, 128>}, {transform_indices = @transform_1, window_bounds = array<i64: 4, 128>}]} {
    %c0 = arith.constant 0 : index
    %0 = memref.load %arg1[%c0] : memref<1xi32, #tpu.memory_space<smem>>
    %1 = tpu.iota {dimensions = array<i32: 0>} : vector<4x1xi32>
    %c4_i32 = arith.constant 4 : i32
    %2 = arith.muli %arg0, %c4_i32 : i32
    %3 = vector.broadcast %2 : i32 to vector<4x1xi32>
    %4 = arith.addi %1, %3 : vector<4x1xi32>
    %c-1640531535_i32 = arith.constant -1640531535 : i32
    %5 = arith.muli %0, %c-1640531535_i32 : i32
    %6 = vector.broadcast %5 : i32 to vector<4x1xi32>
    %7 = arith.xori %4, %6 : vector<4x1xi32>
    %c-2048144789_i32 = arith.constant -2048144789 : i32
    %8 = vector.broadcast %c-2048144789_i32 : i32 to vector<4x1xi32>
    %9 = arith.muli %7, %8 : vector<4x1xi32>
    %c13_i32 = arith.constant 13 : i32
    %10 = vector.broadcast %c13_i32 : i32 to vector<4x1xi32>
    %11 = arith.shrui %9, %10 : vector<4x1xi32>
    %12 = arith.xori %9, %11 : vector<4x1xi32>
    %c-1028477387_i32 = arith.constant -1028477387 : i32
    %13 = vector.broadcast %c-1028477387_i32 : i32 to vector<4x1xi32>
    %14 = arith.muli %12, %13 : vector<4x1xi32>
    %c16_i32 = arith.constant 16 : i32
    %15 = vector.broadcast %c16_i32 : i32 to vector<4x1xi32>
    %16 = arith.shrui %14, %15 : vector<4x1xi32>
    %17 = arith.xori %14, %16 : vector<4x1xi32>
    %c0_0 = arith.constant 0 : index
    %c0_1 = arith.constant 0 : index
    %18 = vector.load %arg2[%c0_0, %c0_1] : memref<4x128xf32, #tpu.memory_space<vmem>>, vector<4x128xf32>
    %19 = tpu.iota {dimensions = array<i32: 1>} : vector<1x128xi32>
    %c5_i32 = arith.constant 5 : i32
    %20 = vector.broadcast %c5_i32 : i32 to vector<1x128xi32>
    %21 = arith.shrui %19, %20 : vector<1x128xi32>
    %c-1640531527_i32 = arith.constant -1640531527 : i32
    %22 = vector.broadcast %c-1640531527_i32 : i32 to vector<1x128xi32>
    %23 = arith.muli %21, %22 : vector<1x128xi32>
    %24 = vector.broadcast %17 : vector<4x1xi32> to vector<4x128xi32>
    %25 = vector.broadcast %23 : vector<1x128xi32> to vector<4x128xi32>
    %26 = arith.xori %24, %25 : vector<4x128xi32>
    %c2146121005_i32 = arith.constant 2146121005 : i32
    %27 = vector.broadcast %c2146121005_i32 : i32 to vector<4x128xi32>
    %28 = arith.muli %26, %27 : vector<4x128xi32>
    %c15_i32 = arith.constant 15 : i32
    %29 = vector.broadcast %c15_i32 : i32 to vector<4x128xi32>
    %30 = arith.shrui %28, %29 : vector<4x128xi32>
    %31 = arith.xori %28, %30 : vector<4x128xi32>
    %c-2073254261_i32 = arith.constant -2073254261 : i32
    %32 = vector.broadcast %c-2073254261_i32 : i32 to vector<4x128xi32>
    %33 = arith.muli %31, %32 : vector<4x128xi32>
    %c8_i32 = arith.constant 8 : i32
    %34 = vector.broadcast %c8_i32 : i32 to vector<4x128xi32>
    %35 = arith.shrui %33, %34 : vector<4x128xi32>
    %c15099494_i32 = arith.constant 15099494 : i32
    %36 = vector.broadcast %c15099494_i32 : i32 to vector<4x128xi32>
    %37 = arith.cmpi ult, %35, %36 : vector<4x128xi32>
    %cst = arith.constant 0.000000e+00 : f32
    %38 = vector.broadcast %cst : f32 to vector<4x128xf32>
    %39 = arith.select %37, %18, %38 : vector<4x128xi1>, vector<4x128xf32>
    %c0_2 = arith.constant 0 : index
    %c0_3 = arith.constant 0 : index
    %40 = vector.load %arg3[%c0_2, %c0_3] : memref<4x128xf32, #tpu.memory_space<vmem>>, vector<4x128xf32>
    tpu.vector_store %arg3[%c0_2, %c0_3], %39 {strides = array<i32>} : memref<4x128xf32, #tpu.memory_space<vmem>>, vector<4x128xf32>,
    return
  }
  func.func @transform_0(%arg0: i32, %arg1: memref<1xi32, #tpu.memory_space<smem>>) -> (i32, i32) {
    %c0_i32 = arith.constant 0 : i32
    %c0_i32_0 = arith.constant 0 : i32
    return %arg0, %c0_i32 : i32, i32
  }
  func.func @transform_1(%arg0: i32, %arg1: memref<1xi32, #tpu.memory_space<smem>>) -> (i32, i32) {
    %c0_i32 = arith.constant 0 : i32
    %c0_i32_0 = arith.constant 0 : i32
    return %arg0, %c0_i32 : i32, i32
  }
}

</mosaic_0001>

<llo_original>
// kernel: tpu_custom_call.1
$region0: #{tpu_custom_call.1}
  #allocation0 [shape = 'u32[]', space=smem, size = 0x4, offset = 0x4, fixed_abs, tag = 'smem constant byte address 0x4 - core index']
  #allocation1 [shape = 'u32[72,128]{1,0:T(1,128)}', space=vmem, size = 0x9000, scoped, tag = 'internal scratch']
  #allocation2 [shape = 's32[1]{0}', space=sflag, size = 0x4, scoped, tag = 'scoped memory for tpu_custom_call.1']
  #allocation3 [shape = 's32[1]{0:T(128)S(6)}', space=smem, size = 0x200, scoped, tag = 'prefetched SMEM operand 0']
  %s0 = inlined_call_operand.<no memory space> [shape: s32[1], index: 0, kind: input, shape index: {}]
  %s1 = inlined_call_operand.hbm [shape: f32[4,128], index: 1, kind: input, shape index: {}]
  %s2 = inlined_call_operand.hbm [shape: f32[4,128], index: 2, kind: output, shape index: {}]
  %s3 = sld [smem:[#allocation0]]
  $region18: #{tpu_custom_call.1} parent=0
    _
  %s5 = ssub.s32 1, %s3
  %s6 = scalar_select 0, %s5, %s3
  %7 = sst [smem:[#allocation3]] %s0
  $region1: #{tpu_custom_call.1} parent=0
    #allocation4 [shape = 'u8[2048]{0}', space=vmem, size = 0x800, scoped, tag = 'input window, operand 1, single buffered']
    #allocation5 [shape = 's32[1]{0}', space=sflag, size = 0x4, scoped, tag = 'scoped memory for tpu_custom_call.1']
    #allocation6 [shape = 's32[1]{0}', space=sflag, size = 0x4, scoped, tag = 'scoped memory for tpu_custom_call.1']
    #allocation7 [shape = 'u8[2048]{0}', space=vmem, size = 0x800, scoped, tag = 'output window, operand 0, single buffered']
    %8 = vsyncpa [#allocation5], 0
    %9 = vsyncpa [#allocation6], 0
    // Predicated region
    $region2: #{tpu_custom_call.1} parent=1 // pred_check
      _
    $region3: #{tpu_custom_call.1} parent=1 // pred_check_branch
      %11 = sbr.rel (0) target = $region5
    $region4: #{tpu_custom_call.1} parent=1 // pred_region
      %13 = vsyncadd [#allocation5], 0
      %s15 = sshll.u32 %s1, 4
      %s16 = int_to_ptr.hbm [resolvable:$true] %s15
      %s17 = sshll.u32 [#allocation4], 4
      %s18 = int_to_ptr.vmem [resolvable:$true] %s17
      %20 = dma.hbm_to_vmem [thread:$0]  %s16, 64, %s18, [#allocation5]
    $region5: #{tpu_custom_call.1} parent=1 // pred_fallthru
      _
    // Predicated region
    $region6: #{tpu_custom_call.1} parent=1 // pred_check
      _
    $region7: #{tpu_custom_call.1} parent=1 // pred_check_branch
      %22 = sbr.rel (0) target = $region9
    $region8: #{tpu_custom_call.1} parent=1 // pred_region
      %24 = dma.done [#allocation5], 64
    $region9: #{tpu_custom_call.1} parent=1 // pred_fallthru
      _
    %s25 = sld [smem:[#allocation3]]
    %v26 = vlaneseq
    %v27 = vshrl.u32 %v26, 7
    %s28 = smul.u32 0, 4
    %v29 = vstv %s28
    %v30 = vadd.s32 %v27, %v29
    %s31 = smul.u32 %s25, 2654435761
    %v32 = vstv %s31
    %v33 = vxor.u32 %v30, %v32
    %v34 = vmul.u32 %v33, 2246822507
    %v35 = vshrl.u32 %v34, 13
    %v36 = vxor.u32 %v34, %v35
    %v37 = vmul.u32 %v36, 3266489909
    %v38 = vshrl.u32 %v37, 16
    %v39 = vxor.u32 %v37, %v38
    %v40 = vld [vmem:[#allocation4] sm:$0xf]
    %v41 = vlaneseq
    %v42 = vand.u32 %v41, 127
    %v43 = vshrl.u32 %v42, 5
    %v44 = vmul.u32 %v43, 2654435769
    %v45 = vxor.u32 %v39, %v44
    %v46 = vmul.u32 %v45, 2146121005
    %v47 = vshrl.u32 %v46, 15
    %v48 = vxor.u32 %v46, %v47
    %v49 = vmul.u32 %v48, 2221713035
    %v50 = vshrl.u32 %v49, 8
    %v51 = vadd.s32 %v50, 2147483648
    %vm53 = vcmp.lt.s32.totalorder %v51, 2162583142
    %v54 = vsel %vm53, %v40, 0.0
    %55 = vst [vmem:[#allocation7] sm:$0xf] %v54
    // Predicated region
    $region10: #{tpu_custom_call.1} parent=1 // pred_check
      _
    $region11: #{tpu_custom_call.1} parent=1 // pred_check_branch
      %57 = sbr.rel (0) target = $region13
    $region12: #{tpu_custom_call.1} parent=1 // pred_region
      %59 = vsyncadd [#allocation6], 0
      %s61 = sshll.u32 [#allocation7], 4
      %s62 = int_to_ptr.vmem [resolvable:$true] %s61
      %s63 = sshll.u32 %s2, 4
      %s64 = int_to_ptr.hbm [resolvable:$true] %s63
      %66 = dma.vmem_to_hbm [thread:$0]  %s62, 64, %s64, [#allocation6]
    $region13: #{tpu_custom_call.1} parent=1 // pred_fallthru
      _
    // Predicated region
    $region14: #{tpu_custom_call.1} parent=1 // pred_check
      _
    $region15: #{tpu_custom_call.1} parent=1 // pred_check_branch
      %68 = sbr.rel (0) target = $region17
    $region16: #{tpu_custom_call.1} parent=1 // pred_region
      %70 = dma.done [#allocation6], 64
    $region17: #{tpu_custom_call.1} parent=1 // pred_fallthru
      _
    %71 = vsyncpa [#allocation5], 1
    %72 = vsyncpa [#allocation6], 1

</llo_original>
